<compile_context>
chip_gen: v7x
topology: tpu7x:2x2x1
jax: 0.10.0
libtpu: 0.0.40
codegen_flags: <defaults>
</compile_context>

<pallas_src>
import jax
import jax.numpy as jnp
from jax.experimental import pallas as pl
from jax.experimental.pallas import tpu as pltpu


def _smash_to_0_kernel(x_ref, o_ref):
    # Elementwise hot path: y = 0 * x (preserves NaN/Inf -> NaN like torch).
    o_ref[...] = x_ref[...] * jnp.zeros((), dtype=x_ref.dtype)


_LANE_CANDIDATES = (1024, 512, 256, 128)


def _round_up(a, m):
    return -(-a // m) * m


def _sublane_multiple(dtype):
    # f32 -> 8, bf16/f16 -> 16, int8/fp8 -> 32 (sub-32-bit dtypes pack sublanes).
    return max(8, 32 // jnp.dtype(dtype).itemsize)


def _block_bytes_and_vmem_limit():
    """Generation-aware (target_block_bytes, vmem_limit_bytes or None)."""
    kind = ""
    try:
        kind = jax.devices()[0].device_kind.lower()
    except Exception:
        pass
    vmem = None
    try:
        vmem = pltpu.get_tpu_info().vmem_capacity_bytes
    except Exception:
        pass
    is_v7 = ("v7" in kind) or (vmem is not None and vmem <= (64 << 20))
    if is_v7:
        # Fast HBM (3.2 TB/s) makes the ~0.35 us/step overhead hurt most, but
        # VMEM/TC is only 64 MiB: 7 MiB blocks keep 4x-block under the 32 MiB
        # scoped default with headroom — no limit override needed.
        return 7 << 20, None
    # v5e / v6e / unknown: 4 MiB blocks; raise the scoped limit so v5e's
    # 16 MiB default doesn't reject the double-buffered 16 MiB footprint.
    return 4 << 20, 64 << 20


def _run_kernel_2d(x2d):
    rows, lane = x2d.shape
    dtype = x2d.dtype
    itemsize = jnp.dtype(dtype).itemsize
    sub = _sublane_multiple(dtype)
    block_bytes, vmem_limit = _block_bytes_and_vmem_limit()

    # Largest sublane-aligned row count that keeps one block <= block_bytes.
    target_rows = max(sub, (block_bytes // (lane * itemsize)) // sub * sub)

    if rows <= sub:
        # Too small to split on sublane granularity: one block == full array
        # (block dims equal array dims, so no (8,128) divisibility needed).
        block_rows = rows
    else:
        # Aim for ~4 tiles (sublane-aligned) so both v7x TensorCores get work
        # and the DMA-in / compute / DMA-out stages overlap, but never exceed
        # the generation-aware VMEM-friendly target block size.
        quarter = _round_up(pl.cdiv(rows, 4), sub)
        block_rows = min(target_rows, max(sub, quarter))

    grid = (pl.cdiv(rows, block_rows),)
    n_bytes = rows * lane * itemsize

    compiler_kwargs = dict(dimension_semantics=("parallel",))
    if vmem_limit is not None:
        compiler_kwargs["vmem_limit_bytes"] = vmem_limit

    return pl.pallas_call(
        _smash_to_0_kernel,
        out_shape=jax.ShapeDtypeStruct((rows, lane), dtype),
        grid=grid,
        in_specs=[pl.BlockSpec((block_rows, lane), lambda i: (i, 0))],
        out_specs=pl.BlockSpec((block_rows, lane), lambda i: (i, 0)),
        compiler_params=pltpu.CompilerParams(**compiler_kwargs),
        cost_estimate=pl.CostEstimate(
            flops=rows * lane,
            transcendentals=0,
            bytes_accessed=2 * n_bytes,
        ),
    )(x2d)


def sigma_prior_forward(x, *, preserve_nan=True):
    """Forward pass of SigmaPrior / SmashTo0: returns 0 * x, same shape/dtype.

    preserve_nan=True keeps torch's exact `0 * x` semantics (0*NaN = NaN,
    0*Inf = NaN). Set False for a write-only fast path (pure zeros, half the
    HBM traffic) when callers don't rely on NaN propagation.
    """
    orig_shape = x.shape
    dtype = x.dtype
    n_elem = x.size

    if n_elem == 0:
        return jnp.zeros(orig_shape, dtype)

    if not preserve_nan:
        # Semantics change (0*NaN -> 0): skip reading x entirely.
        return jnp.zeros(orig_shape, dtype)

    # Pick the widest lane-dense width dividing n_elem so we can reshape
    # directly (free for contiguous arrays) — no pad / slice copies.
    lane = next((l for l in _LANE_CANDIDATES if n_elem % l == 0), None)
    if lane is None:
        # Ragged (n_elem not a multiple of 128): a pad+kernel+slice round-trip
        # would ~triple HBM traffic, so hand this case to a single fused XLA
        # elementwise op with identical 0*x semantics.
        return x * jnp.zeros((), dtype)

    out2d = _run_kernel_2d(jnp.reshape(x, (n_elem // lane, lane)))
    return out2d.reshape(orig_shape)


if __name__ == "__main__":
    key = jax.random.PRNGKey(0)

    # Primary example: small NCHW input consistent with the module's usage.
    x = jax.random.normal(key, (2, 4, 16, 16), dtype=jnp.float32)
    y = jax.block_until_ready(sigma_prior_forward(x))
    assert y.shape == x.shape and y.dtype == x.dtype
    assert bool(jnp.all(y == 0.0))

    # NaN propagation matches torch's `0 * x` (0 * NaN = NaN).
    x_nan = x.at[0, 0, 0, 0].set(jnp.nan)
    y_nan = jax.block_until_ready(sigma_prior_forward(x_nan))
    assert bool(jnp.isnan(y_nan[0, 0, 0, 0]))
    assert bool(jnp.all(y_nan[0, 0, 0, 1:] == 0.0))

    # Multi-tile split path (rows=32 -> ~4 sublane-aligned tiles even though
    # everything would fit in one block).
    x_mid = jax.random.normal(key, (2, 64, 16, 16), dtype=jnp.float32)
    y_mid = jax.block_until_ready(sigma_prior_forward(x_mid))
    assert y_mid.shape == x_mid.shape and bool(jnp.all(y_mid == 0.0))

    # Partial-last-block path (rows=1000, block_rows=256 -> ragged final tile,
    # exercising Pallas' masked writeback of the partial output block).
    x_big = jax.random.normal(key, (8, 125, 32, 32), dtype=jnp.float32)
    y_big = jax.block_until_ready(sigma_prior_forward(x_big))
    assert y_big.shape == x_big.shape and bool(jnp.all(y_big == 0.0))

    # Ragged (non-128-divisible) fallback path (single fused XLA op).
    x_ragged = jax.random.normal(key, (3, 5, 7, 11), dtype=jnp.float32)
    y_ragged = jax.block_until_ready(sigma_prior_forward(x_ragged))
    assert y_ragged.shape == x_ragged.shape and bool(jnp.all(y_ragged == 0.0))

    # Optional write-only variant (documented semantics change).
    y_fast = jax.block_until_ready(sigma_prior_forward(x, preserve_nan=False))
    assert y_fast.shape == x.shape and bool(jnp.all(y_fast == 0.0))

    print("KERNEL_OK")
</pallas_src>

<mosaic_0001>
module attributes {stable_mosaic.version = 11 : i64} {
  func.func @_smash_to_0_kernel(%arg0: i32, %arg1: memref<2x1024xf32, #tpu.memory_space<vmem>>, %arg2: memref<2x1024xf32, #tpu.memory_space<vmem>>) attributes {dimension_semantics = [#tpu.dimension_semantics<parallel>], iteration_bounds = array<i64: 1>, scalar_prefetch = 0 : i64, scratch_operands = 0 : i64, tpu.core_type = #tpu.core_type<tc>, window_params = [{transform_indices = @transform_0, window_bounds = array<i64: 2, 1024>}, {transform_indices = @transform_1, window_bounds = array<i64: 2, 1024>}]} {
    %c0 = arith.constant 0 : index
    %c0_0 = arith.constant 0 : index
    %0 = vector.load %arg1[%c0, %c0_0] : memref<2x1024xf32, #tpu.memory_space<vmem>>, vector<2x1024xf32>
    %cst = arith.constant 0.000000e+00 : f32
    %1 = vector.broadcast %cst : f32 to vector<2x1024xf32>
    %2 = arith.mulf %0, %1 : vector<2x1024xf32>
    %c0_1 = arith.constant 0 : index
    %c0_2 = arith.constant 0 : index
    %3 = vector.load %arg2[%c0_1, %c0_2] : memref<2x1024xf32, #tpu.memory_space<vmem>>, vector<2x1024xf32>
    tpu.vector_store %arg2[%c0_1, %c0_2], %2 {strides = array<i32>} : memref<2x1024xf32, #tpu.memory_space<vmem>>, vector<2x1024xf32>,
    return
  }
  func.func @transform_0(%arg0: i32) -> (i32, i32) {
    %c0_i32 = arith.constant 0 : i32
    %c0_i32_0 = arith.constant 0 : i32
    return %arg0, %c0_i32 : i32, i32
  }
  func.func @transform_1(%arg0: i32) -> (i32, i32) {
    %c0_i32 = arith.constant 0 : i32
    %c0_i32_0 = arith.constant 0 : i32
    return %arg0, %c0_i32 : i32, i32
  }
}

</mosaic_0001>

<llo_original>
// kernel: tpu_custom_call.1
$region0: #{tpu_custom_call.1}
  #allocation0 [shape = 'u32[]', space=smem, size = 0x4, offset = 0x4, fixed_abs, tag = 'smem constant byte address 0x4 - core index']
  #allocation1 [shape = 'u32[144,128]{1,0:T(1,128)}', space=vmem, size = 0x12000, scoped, tag = 'internal scratch']
  %s0 = inlined_call_operand.hbm [shape: f32[2,1024], index: 0, kind: input, shape index: {}]
  %s1 = inlined_call_operand.hbm [shape: f32[2,1024], index: 1, kind: output, shape index: {}]
  %s2 = sld [smem:[#allocation0]]
  $region18: #{tpu_custom_call.1} parent=0
    _
  %s4 = ssub.s32 1, %s2
  %s5 = scalar_select 0, %s4, %s2
  $region1: #{tpu_custom_call.1} parent=0
    #allocation2 [shape = 'u8[8192]{0}', space=vmem, size = 0x2000, scoped, tag = 'input window, operand 0, single buffered']
    #allocation3 [shape = 's32[1]{0}', space=sflag, size = 0x4, scoped, tag = 'scoped memory for tpu_custom_call.1']
    #allocation4 [shape = 's32[1]{0}', space=sflag, size = 0x4, scoped, tag = 'scoped memory for tpu_custom_call.1']
    #allocation5 [shape = 'u8[8192]{0}', space=vmem, size = 0x2000, scoped, tag = 'output window, operand 0, single buffered']
    %6 = vsyncpa [#allocation3], 0
    %7 = vsyncpa [#allocation4], 0
    // Predicated region
    $region2: #{tpu_custom_call.1} parent=1 // pred_check
      _
    $region3: #{tpu_custom_call.1} parent=1 // pred_check_branch
      %9 = sbr.rel (0) target = $region5
    $region4: #{tpu_custom_call.1} parent=1 // pred_region
      %s11 = ssub.s32 256, 256
      %12 = vsyncadd [#allocation3], %s11
      %s14 = sshll.u32 [#allocation2], 4
      %s15 = int_to_ptr.vmem [resolvable:$true] %s14
      %17 = dma.hbm_to_vmem [thread:$0]  %s0, 256, %s15, [#allocation3]
    $region5: #{tpu_custom_call.1} parent=1 // pred_fallthru
      _
    // Predicated region
    $region6: #{tpu_custom_call.1} parent=1 // pred_check
      _
    $region7: #{tpu_custom_call.1} parent=1 // pred_check_branch
      %19 = sbr.rel (0) target = $region9
    $region8: #{tpu_custom_call.1} parent=1 // pred_region
      %20 = dma.done [#allocation3], 256
    $region9: #{tpu_custom_call.1} parent=1 // pred_fallthru
      _
    %v21 = vld [vmem:[#allocation2] sm:$0xff]
    %v22 = vld [vmem:[#allocation2 + $0x8] sm:$0xff]
    %v23 = vmul.f32 %v21, 0.0
    %v24 = vmul.f32 %v22, 0.0
    %25 = vst [vmem:[#allocation5] sm:$0xff] %v23
    %26 = vst [vmem:[#allocation5 + $0x8] sm:$0xff] %v24
    // Predicated region
    $region10: #{tpu_custom_call.1} parent=1 // pred_check
      _
    $region11: #{tpu_custom_call.1} parent=1 // pred_check_branch
      %28 = sbr.rel (0) target = $region13
    $region12: #{tpu_custom_call.1} parent=1 // pred_region
      %s30 = ssub.s32 256, 256
      %31 = vsyncadd [#allocation4], %s30
      %s33 = sshll.u32 [#allocation5], 4
      %s34 = int_to_ptr.vmem [resolvable:$true] %s33
      %36 = dma.vmem_to_hbm [thread:$0]  %s34, 256, %s1, [#allocation4]
    $region13: #{tpu_custom_call.1} parent=1 // pred_fallthru
      _
    // Predicated region
    $region14: #{tpu_custom_call.1} parent=1 // pred_check
      _
    $region15: #{tpu_custom_call.1} parent=1 // pred_check_branch
      %38 = sbr.rel (0) target = $region17
    $region16: #{tpu_custom_call.1} parent=1 // pred_region
      %39 = dma.done [#allocation4], 256
    $region17: #{tpu_custom_call.1} parent=1 // pred_fallthru
      _
    %40 = vsyncpa [#allocation3], 1
    %41 = vsyncpa [#allocation4], 1

</llo_original>
